<compile_context>
chip_gen: v7x
topology: tpu7x:2x2x1
jax: 0.10.0
libtpu: 0.0.40
codegen_flags: <defaults>
</compile_context>

<pallas_src>
import jax
import jax.numpy as jnp
from jax.experimental import pallas as pl
from jax.experimental.pallas import tpu as pltpu


def _identity_kernel(x_ref, o_ref):
    # Pure pass-through: copy the current VMEM tile.  The auto-generated
    # double-buffered pipeline fully overlaps the HBM<->VMEM DMAs.
    o_ref[...] = x_ref[...]


def _round_up(n, m):
    return ((n + m - 1) // m) * m


def _lane_dense_2d(total, last_dim):
    """Factor `total` into (rows, lanes) with a lane-dense (multiple-of-128) last dim.

    Row-major reshape preserves element order, so any factorization is an
    identity.  Search all multiples of 128 (largest first, capped at 8192) so
    odd-ish NCHW shapes still get full-lane stores whenever `total` allows it.
    """
    for lanes in range(8192, 127, -128):
        if total % lanes == 0:
            return total // lanes, lanes
    # No multiple-of-128 divisor.  Keep the original trailing axis only if it
    # is already lane-dense; otherwise flatten to one long row so every tile
    # but the final partial one is a full-lane store.
    if last_dim >= 128 and total % last_dim == 0:
        return total // last_dim, last_dim
    return 1, total


def _pallas_copy(x, *, donate_input=False):
    """Materialize a fresh buffer equal to x via a bandwidth-bound Pallas copy."""
    orig_shape = x.shape
    dtype = x.dtype
    total = x.size
    if total == 0:
        return x

    itemsize = jnp.dtype(dtype).itemsize
    last_dim = orig_shape[-1] if x.ndim >= 1 else 1
    R, C = _lane_dense_2d(total, last_dim)
    # NOTE: free only for contiguous row-major x; a non-default layout makes
    # XLA insert a relayout copy ahead of the kernel (perf, not correctness).
    x2 = x.reshape(R, C)

    # Sublane granularity: 8 rows for 32-bit, 16 for 16-bit, 32 for 8-bit.
    sub = {4: 8, 2: 16, 1: 32}.get(itemsize, 8)

    # Lane tile: full row when narrow, else a large multiple of 128.
    tc = C if C <= 2048 else 2048

    # ~4 MiB tiles: at 3.2 TB/s (v7x) a tile's read+write takes ~2.5 us, so the
    # ~0.35 us/step pipeline overhead drops to ~10-15%; on v6e/v5e it is even
    # smaller.  Double-buffered in+out is ~16 MiB of VMEM, so raise the scoped
    # limit explicitly (v5e default is only 16 MiB; 40 MiB is safe everywhere,
    # well under v7x's 64 MiB physical VMEM).
    max_tile_bytes = 4 * 1024 * 1024
    tr = max(sub, (max_tile_bytes // (tc * itemsize)) // sub * sub)
    if tr >= R:
        tr = R  # full row extent is always a legal block dim
    grid_r, grid_c = pl.cdiv(R, tr), pl.cdiv(C, tc)

    # Megacore (v7x has 2 TensorCores): only shrink tiles when the *total*
    # grid has a single step; otherwise prefer an even number of grid points
    # so the last parallel step does not leave one core idle.
    if grid_r * grid_c < 2 and R >= 2 * sub:
        tr = _round_up(pl.cdiv(R, 2), sub)
        grid_r = pl.cdiv(R, tr)
    elif (grid_r * grid_c) % 2 == 1 and tr > sub:
        tr_even = _round_up(pl.cdiv(R, grid_r + 1), sub)
        if tr_even >= sub and (pl.cdiv(R, tr_even) * grid_c) % 2 == 0:
            tr = tr_even
            grid_r = pl.cdiv(R, tr)

    grid = (grid_r, grid_c)

    kwargs = {}
    if donate_input:
        # Only alias when the caller actually donates x; otherwise XLA must
        # insert a defensive copy of x first and HBM traffic roughly doubles.
        kwargs["input_output_aliases"] = {0: 0}

    out2 = pl.pallas_call(
        _identity_kernel,
        out_shape=jax.ShapeDtypeStruct((R, C), dtype),
        grid=grid,
        in_specs=[pl.BlockSpec((tr, tc), lambda i, j: (i, j))],
        out_specs=pl.BlockSpec((tr, tc), lambda i, j: (i, j)),
        compiler_params=pltpu.CompilerParams(
            dimension_semantics=("parallel", "parallel"),
            vmem_limit_bytes=40 * 1024 * 1024,
        ),
        cost_estimate=pl.CostEstimate(
            flops=0,
            transcendentals=0,
            bytes_accessed=2 * total * itemsize,
        ),
        **kwargs,
    )(x2)

    return out2.reshape(orig_shape)


def identity(x, *, materialize=False, donate_input=False):
    """Pallas equivalent of Identity.forward (``return x``).

    Identity has zero compute, so by default this short-circuits at the JAX
    level and returns x unchanged -- not touching HBM at all is the only way
    to beat the bandwidth roofline.  Set materialize=True when a fresh,
    non-aliased buffer is explicitly required; that path runs the
    bandwidth-bound Pallas copy kernel.
    """
    if not materialize:
        return x
    return _pallas_copy(x, donate_input=donate_input)


if __name__ == "__main__":
    key = jax.random.PRNGKey(0)
    # Small NCHW input consistent with a feature-map identity: (N, C, H, W)
    x = jax.random.normal(key, (2, 4, 16, 16), dtype=jnp.float32)

    # Default path: true no-op identity (no kernel, no HBM traffic).
    y0 = identity(x)
    assert y0 is x, "default identity path must be a pure pass-through"

    # Materialized path: run the Pallas copy kernel once.
    y = identity(x, materialize=True)
    y = jax.block_until_ready(y)

    assert y.shape == x.shape, (y.shape, x.shape)
    assert y.dtype == x.dtype, (y.dtype, x.dtype)
    assert bool(jnp.all(y == x)), "Identity kernel output differs from input"

    print("KERNEL_OK")
</pallas_src>

<mosaic_0001>
module attributes {stable_mosaic.version = 11 : i64} {
  func.func @_identity_kernel(%arg0: i32, %arg1: i32, %arg2: memref<1x2048xf32, #tpu.memory_space<vmem>>, %arg3: memref<1x2048xf32, #tpu.memory_space<vmem>>) attributes {dimension_semantics = [#tpu.dimension_semantics<parallel>, #tpu.dimension_semantics<parallel>], iteration_bounds = array<i64: 1, 1>, scalar_prefetch = 0 : i64, scratch_operands = 0 : i64, tpu.core_type = #tpu.core_type<tc>, window_params = [{transform_indices = @transform_0, window_bounds = array<i64: 1, 2048>}, {transform_indices = @transform_1, window_bounds = array<i64: 1, 2048>}]} {
    %c0 = arith.constant 0 : index
    %c0_0 = arith.constant 0 : index
    %0 = vector.load %arg2[%c0, %c0_0] : memref<1x2048xf32, #tpu.memory_space<vmem>>, vector<1x2048xf32>
    %c0_1 = arith.constant 0 : index
    %c0_2 = arith.constant 0 : index
    %1 = vector.load %arg3[%c0_1, %c0_2] : memref<1x2048xf32, #tpu.memory_space<vmem>>, vector<1x2048xf32>
    tpu.vector_store %arg3[%c0_1, %c0_2], %0 {strides = array<i32>} : memref<1x2048xf32, #tpu.memory_space<vmem>>, vector<1x2048xf32>,
    return
  }
  func.func @transform_0(%arg0: i32, %arg1: i32) -> (i32, i32) {
    %c0_i32 = arith.constant 0 : i32
    return %arg0, %arg1 : i32, i32
  }
  func.func @transform_1(%arg0: i32, %arg1: i32) -> (i32, i32) {
    %c0_i32 = arith.constant 0 : i32
    return %arg0, %arg1 : i32, i32
  }
}

</mosaic_0001>

<llo_original>
// kernel: tpu_custom_call.1
$region0: #{tpu_custom_call.1}
  #allocation0 [shape = 'u32[]', space=smem, size = 0x4, offset = 0x4, fixed_abs, tag = 'smem constant byte address 0x4 - core index']
  #allocation1 [shape = 'u32[144,128]{1,0:T(1,128)}', space=vmem, size = 0x12000, scoped, tag = 'internal scratch']
  %s0 = inlined_call_operand.hbm [shape: f32[1,2048], index: 0, kind: input, shape index: {}]
  %s1 = inlined_call_operand.hbm [shape: f32[1,2048], index: 1, kind: output, shape index: {}]
  %s2 = sld [smem:[#allocation0]]
  $region18: #{tpu_custom_call.1} parent=0
    _
  %s4 = ssub.s32 1, %s2
  %s5 = scalar_select 0, %s4, %s2
  $region1: #{tpu_custom_call.1} parent=0
    #allocation2 [shape = 'u8[8192]{0}', space=vmem, size = 0x2000, scoped, tag = 'input window, operand 0, single buffered']
    #allocation3 [shape = 's32[1]{0}', space=sflag, size = 0x4, scoped, tag = 'scoped memory for tpu_custom_call.1']
    #allocation4 [shape = 's32[1]{0}', space=sflag, size = 0x4, scoped, tag = 'scoped memory for tpu_custom_call.1']
    #allocation5 [shape = 'u8[8192]{0}', space=vmem, size = 0x2000, scoped, tag = 'output window, operand 0, single buffered']
    %6 = vsyncpa [#allocation3], 0
    %7 = vsyncpa [#allocation4], 0
    // Predicated region
    $region2: #{tpu_custom_call.1} parent=1 // pred_check
      _
    $region3: #{tpu_custom_call.1} parent=1 // pred_check_branch
      %9 = sbr.rel (0) target = $region5
    $region4: #{tpu_custom_call.1} parent=1 // pred_region
      %s11 = ssub.s32 256, 256
      %12 = vsyncadd [#allocation3], %s11
      %s14 = sshll.u32 [#allocation2], 4
      %s15 = int_to_ptr.vmem [resolvable:$true] %s14
      %17 = dma.hbm_to_vmem [thread:$0]  %s0, 256, %s15, [#allocation3]
    $region5: #{tpu_custom_call.1} parent=1 // pred_fallthru
      _
    // Predicated region
    $region6: #{tpu_custom_call.1} parent=1 // pred_check
      _
    $region7: #{tpu_custom_call.1} parent=1 // pred_check_branch
      %19 = sbr.rel (0) target = $region9
    $region8: #{tpu_custom_call.1} parent=1 // pred_region
      %20 = dma.done [#allocation3], 256
    $region9: #{tpu_custom_call.1} parent=1 // pred_fallthru
      _
    %v21 = vld [vmem:[#allocation2] sm:$0xff]
    %v22 = vld [vmem:[#allocation2 + $0x8] sm:$0xff]
    %23 = vst [vmem:[#allocation5] sm:$0xff] %v21
    %24 = vst [vmem:[#allocation5 + $0x8] sm:$0xff] %v22
    // Predicated region
    $region10: #{tpu_custom_call.1} parent=1 // pred_check
      _
    $region11: #{tpu_custom_call.1} parent=1 // pred_check_branch
      %26 = sbr.rel (0) target = $region13
    $region12: #{tpu_custom_call.1} parent=1 // pred_region
      %s28 = ssub.s32 256, 256
      %29 = vsyncadd [#allocation4], %s28
      %s31 = sshll.u32 [#allocation5], 4
      %s32 = int_to_ptr.vmem [resolvable:$true] %s31
      %34 = dma.vmem_to_hbm [thread:$0]  %s32, 256, %s1, [#allocation4]
    $region13: #{tpu_custom_call.1} parent=1 // pred_fallthru
      _
    // Predicated region
    $region14: #{tpu_custom_call.1} parent=1 // pred_check
      _
    $region15: #{tpu_custom_call.1} parent=1 // pred_check_branch
      %36 = sbr.rel (0) target = $region17
    $region16: #{tpu_custom_call.1} parent=1 // pred_region
      %37 = dma.done [#allocation4], 256
    $region17: #{tpu_custom_call.1} parent=1 // pred_fallthru
      _
    %38 = vsyncpa [#allocation3], 1
    %39 = vsyncpa [#allocation4], 1

</llo_original>
